<compile_context>
chip_gen: v6e
topology: v6e:2x2x1
jax: 0.10.0
libtpu: 0.0.40
codegen_flags: <defaults>
</compile_context>

<pallas_src>
import jax
import jax.numpy as jnp
from jax.experimental import pallas as pl
from jax.experimental.pallas import tpu as pltpu


def koopman_forward_kernel(x_ref, u_ref, at_ref, bt_ref, o_ref):
    # x_ref : (B, Nk)    at_ref : (Nk, Nk)  == Alift.T
    # u_ref : (B, Ud)    bt_ref : (Ud, Nk)  == Blift.T
    # o_ref : (B, Nk)
    #
    # One MXU GEMM for the Nk x Nk term.
    acc = jnp.dot(x_ref[...], at_ref[...], preferred_element_type=jnp.float32)

    # u @ Blift.T has K = u_dim (typically 2): a full MXU pass would be pure
    # push/drain overhead, so do it as Ud broadcast FMAs on the VPU instead
    # (statically unrolled; falls back to the MXU if u_dim is not tiny).
    u = u_ref[...].astype(jnp.float32)
    bt = bt_ref[...].astype(jnp.float32)
    ud = u.shape[1]
    if ud <= 8:
        for j in range(ud):
            acc = acc + u[:, j:j + 1] * bt[j:j + 1, :]
    else:
        acc = acc + jnp.dot(u, bt, preferred_element_type=jnp.float32)

    o_ref[...] = acc.astype(o_ref.dtype)


def make_koopman_forward(Alift, Blift):
    """Returns forward(x, u) = x @ Alift.T + u @ Blift.T as a Pallas kernel.

    The weight transposes are done exactly once here (weights are static
    checkpoint data), not per call.
    """
    Nk = Alift.shape[0]
    Ud = Blift.shape[1]
    assert Alift.shape == (Nk, Nk)
    assert Blift.shape == (Nk, Ud)

    # One-time weight prep (evaluated eagerly, outside the jitted hot path).
    At = jnp.asarray(Alift.T, dtype=jnp.float32)   # (Nk, Nk)
    Bt = jnp.asarray(Blift.T, dtype=jnp.float32)   # (Ud, Nk)

    vmem = pl.BlockSpec(memory_space=pltpu.MemorySpace.VMEM)

    @jax.jit
    def forward(x, u):
        B = x.shape[0]
        return pl.pallas_call(
            koopman_forward_kernel,
            out_shape=jax.ShapeDtypeStruct((B, Nk), jnp.float32),
            # No grid: single invocation, whole-array operands resident in
            # VMEM (no pipeline prologue/epilogue, no double-buffering).
            in_specs=[vmem, vmem, vmem, vmem],
            out_specs=vmem,
        )(x, u, At, Bt)

    return forward


if __name__ == "__main__":
    # Small deterministic problem consistent with the module's forward():
    #   batch=8, Nkoopman=32, u_dim=2
    batch, Nkoopman, u_dim = 8, 32, 2

    key = jax.random.PRNGKey(0)
    k_x, k_u, k_A, k_B = jax.random.split(key, 4)

    x = jax.random.normal(k_x, (batch, Nkoopman), dtype=jnp.float32)
    u = jax.random.normal(k_u, (batch, u_dim), dtype=jnp.float32)

    # Deterministic stand-ins for Alift / Blift (checkpoint weights).
    Alift = jax.random.normal(k_A, (Nkoopman, Nkoopman), dtype=jnp.float32) * 0.1
    Blift = jax.random.normal(k_B, (Nkoopman, u_dim), dtype=jnp.float32) * 0.1

    forward = make_koopman_forward(Alift, Blift)
    out = forward(x, u)
    out = jax.block_until_ready(out)

    # Reference check (plain JAX) to make sure semantics match nn.Linear.
    ref = x @ Alift.T + u @ Blift.T
    assert out.shape == (batch, Nkoopman)
    assert jnp.allclose(out, ref, atol=1e-5, rtol=1e-5), "mismatch vs reference"

    print("KERNEL_OK")
</pallas_src>

<mosaic_0001>
module attributes {stable_mosaic.version = 11 : i64} {
  func.func @koopman_forward_kernel(%arg0: memref<8x32xf32, #tpu.memory_space<vmem>>, %arg1: memref<8x2xf32, #tpu.memory_space<vmem>>, %arg2: memref<32x32xf32, #tpu.memory_space<vmem>>, %arg3: memref<2x32xf32, #tpu.memory_space<vmem>>, %arg4: memref<8x32xf32, #tpu.memory_space<vmem>>) attributes {dimension_semantics = [], scalar_prefetch = 0 : i64, scratch_operands = 0 : i64, tpu.core_type = #tpu.core_type<tc>} {
    %c0 = arith.constant 0 : index
    %c0_0 = arith.constant 0 : index
    %0 = vector.load %arg0[%c0, %c0_0] : memref<8x32xf32, #tpu.memory_space<vmem>>, vector<8x32xf32>
    %c0_1 = arith.constant 0 : index
    %c0_2 = arith.constant 0 : index
    %1 = vector.load %arg2[%c0_1, %c0_2] : memref<32x32xf32, #tpu.memory_space<vmem>>, vector<32x32xf32>
    %cst = arith.constant dense<0.000000e+00> : vector<8x32xf32>
    %2 = tpu.matmul %0, %1, %cst {dimension_numbers = #tpu.dot_dimension_numbers<[1], [0], [0], [1], [0, 0, 1, 1], [], []>} : vector<8x32xf32>, vector<32x32xf32>, vector<8x32xf32> -> vector<8x32xf32>
    %c0_3 = arith.constant 0 : index
    %c0_4 = arith.constant 0 : index
    %3 = vector.load %arg1[%c0_3, %c0_4] : memref<8x2xf32, #tpu.memory_space<vmem>>, vector<8x2xf32>
    %c0_5 = arith.constant 0 : index
    %c0_6 = arith.constant 0 : index
    %4 = vector.load %arg3[%c0_5, %c0_6] : memref<2x32xf32, #tpu.memory_space<vmem>>, vector<2x32xf32>
    %5 = vector.extract_strided_slice %3 {offsets = [0, 0], sizes = [8, 1], strides = [1, 1]} : vector<8x2xf32> to vector<8x1xf32>
    %6 = vector.extract_strided_slice %4 {offsets = [0, 0], sizes = [1, 32], strides = [1, 1]} : vector<2x32xf32> to vector<1x32xf32>
    %7 = vector.broadcast %5 : vector<8x1xf32> to vector<8x32xf32>
    %8 = vector.broadcast %6 : vector<1x32xf32> to vector<8x32xf32>
    %9 = arith.mulf %7, %8 : vector<8x32xf32>
    %10 = arith.addf %2, %9 : vector<8x32xf32>
    %11 = vector.extract_strided_slice %3 {offsets = [0, 1], sizes = [8, 1], strides = [1, 1]} : vector<8x2xf32> to vector<8x1xf32>
    %12 = vector.extract_strided_slice %4 {offsets = [1, 0], sizes = [1, 32], strides = [1, 1]} : vector<2x32xf32> to vector<1x32xf32>
    %13 = vector.broadcast %11 : vector<8x1xf32> to vector<8x32xf32>
    %14 = vector.broadcast %12 : vector<1x32xf32> to vector<8x32xf32>
    %15 = arith.mulf %13, %14 : vector<8x32xf32>
    %16 = arith.addf %10, %15 : vector<8x32xf32>
    %c0_7 = arith.constant 0 : index
    %c0_8 = arith.constant 0 : index
    %17 = vector.load %arg4[%c0_7, %c0_8] : memref<8x32xf32, #tpu.memory_space<vmem>>, vector<8x32xf32>
    tpu.vector_store %arg4[%c0_7, %c0_8], %16 {strides = array<i32>} : memref<8x32xf32, #tpu.memory_space<vmem>>, vector<8x32xf32>,
    return
  }
}

</mosaic_0001>

<llo_original>
// kernel: forward.1
$region0: #{forward.1}
  #allocation0 [shape = 'u32[]', space=smem, size = 0x4, offset = 0x4, fixed_abs, tag = 'smem constant byte address 0x4 - core index']
  #allocation1 [shape = 'u32[144,128]{1,0:T(1,128)}', space=vmem, size = 0x12000, scoped, tag = 'internal scratch']
  %s0 = inlined_call_operand.vmem [shape: f32[8,32], index: 0, kind: input, shape index: {}]
  %s1 = inlined_call_operand.vmem [shape: f32[8,2], index: 1, kind: input, shape index: {}]
  %s2 = inlined_call_operand.hbm [shape: f32[32,32], index: 2, kind: input, shape index: {}]
  %s3 = inlined_call_operand.vmem [shape: f32[2,32], index: 3, kind: input, shape index: {}]
  %s4 = inlined_call_operand.hbm [shape: f32[8,32], index: 4, kind: output, shape index: {}]
  %s5 = sld [smem:[#allocation0]]
  $region30: #{forward.1} parent=0
    _
  %s7 = ssub.s32 1, %s5
  %s8 = scalar_select 0, %s7, %s5
  $region1: #{forward.1} parent=0
    #allocation2 [shape = 'u8[16384]{0}', space=vmem, size = 0x4000, scoped, tag = 'input window, operand 2, single buffered']
    #allocation3 [shape = 's32[1]{0}', space=sflag, size = 0x4, scoped, tag = 'scoped memory for forward.1']
    #allocation4 [shape = 's32[1]{0}', space=sflag, size = 0x4, scoped, tag = 'scoped memory for forward.1']
    #allocation5 [shape = 'u8[4096]{0}', space=vmem, size = 0x1000, scoped, tag = 'output window, operand 0, single buffered']
    %9 = vsyncpa [#allocation3], 0
    %10 = vsyncpa [#allocation4], 0
    // Predicated region
    $region2: #{forward.1} parent=1 // pred_check
      _
    $region3: #{forward.1} parent=1 // pred_check_branch
      %12 = sbr.rel (0) target = $region5
    $region4: #{forward.1} parent=1 // pred_region
      _
    $region5: #{forward.1} parent=1 // pred_fallthru
      _
    // Predicated region
    $region6: #{forward.1} parent=1 // pred_check
      _
    $region7: #{forward.1} parent=1 // pred_check_branch
      %14 = sbr.rel (0) target = $region9
    $region8: #{forward.1} parent=1 // pred_region
      _
    $region9: #{forward.1} parent=1 // pred_fallthru
      _
    // Predicated region
    $region10: #{forward.1} parent=1 // pred_check
      _
    $region11: #{forward.1} parent=1 // pred_check_branch
      %16 = sbr.rel (0) target = $region13
    $region12: #{forward.1} parent=1 // pred_region
      %s18 = ssub.s32 512, 512
      %19 = vsyncadd [#allocation3], %s18
      %s20 = sshll.u32 [#allocation2], 4
      %s21 = int_to_ptr.vmem [resolvable:$true] %s20
      %26 = dma.hbm_to_vmem [thread:$0]  %s2, 512, %s21, [#allocation3], 128, 128, 8
    $region13: #{forward.1} parent=1 // pred_fallthru
      _
    // Predicated region
    $region14: #{forward.1} parent=1 // pred_check
      _
    $region15: #{forward.1} parent=1 // pred_check_branch
      %28 = sbr.rel (0) target = $region17
    $region16: #{forward.1} parent=1 // pred_region
      _
    $region17: #{forward.1} parent=1 // pred_fallthru
      _
    // Predicated region
    $region18: #{forward.1} parent=1 // pred_check
      _
    $region19: #{forward.1} parent=1 // pred_check_branch
      %30 = sbr.rel (0) target = $region21
    $region20: #{forward.1} parent=1 // pred_region
      %31 = dma.done [#allocation3], 512
    $region21: #{forward.1} parent=1 // pred_fallthru
      _
    %v32 = vld [vmem:[%s0] sm:$0xff]
    %v33 = vld [vmem:[#allocation2] sm:$0xff]
    %v34 = vld [vmem:[#allocation2 + $0x8] sm:$0xff]
    %v35 = vld [vmem:[#allocation2 + $0x10] sm:$0xff]
    %v36 = vld [vmem:[#allocation2 + $0x18] sm:$0xff]
    %v37 = vld [vmem:[%s1] sm:$0xff]
    %v38 = vld [vmem:[%s3] sm:$0x3]
    %40 = vset.pattern.permute.xlu0 0
    %41 = vperm.xlu0 %40, %v37
    %v42 = vpop.permute.xlu0 %41
    %v44 = vlaneseq
    %v45 = vshrl.u32 %v44, 7
    %v46 = vsub.s32 0, %v45
    %v47 = vrot.slane %v38, %v46
    %v48 = vmul.f32 %v42, %v47
    %vm49 = vcmask 261120
    %v51 = vsel %vm49, %v32, 0
    %53 = vmatprep.subr.mxu0 0.0
    %54 = vmatpush1.msra.mxu0 0.0
    %55 = vmatprep.subr.mxu0 0.0
    %56 = vmatpush1.msra.mxu0 0.0
    %57 = vmatprep.subr.mxu0 0.0
    %58 = vmatpush1.msra.mxu0 0.0
    %59 = vmatprep.subr.mxu0 0.0
    %60 = vmatpush1.msra.mxu0 0.0
    %61 = vmatprep.subr.mxu0 0.0
    %62 = vmatpush1.msra.mxu0 0.0
    %63 = vmatprep.subr.mxu0 0.0
    %64 = vmatpush1.msra.mxu0 0.0
    %65 = vmatprep.subr.mxu0 0.0
    %66 = vmatpush1.msra.mxu0 0.0
    %67 = vmatprep.subr.mxu0 0.0
    %68 = vmatpush1.msra.mxu0 0.0
    %69 = vmatprep.subr.mxu0 0.0
    %70 = vmatpush1.msra.mxu0 0.0
    %71 = vmatprep.subr.mxu0 0.0
    %72 = vmatpush1.msra.mxu0 0.0
    %73 = vmatprep.subr.mxu0 0.0
    %74 = vmatpush1.msra.mxu0 0.0
    %75 = vmatprep.subr.mxu0 0.0
    %76 = vmatpush1.msra.mxu0 0.0
    %77 = vmatprep.subr.mxu0 0.0
    %78 = vmatpush1.msra.mxu0 %v36
    %79 = vmatprep.subr.mxu0 0.0
    %80 = vmatpush1.msra.mxu0 %v35
    %81 = vmatprep.subr.mxu0 0.0
    %82 = vmatpush1.msra.mxu0 %v34
    %83 = vmatprep.subr.mxu0 0.0
    %84 = vmatpush1.msra.mxu0 %v33
    %85 = vmatprep.subr.mxu0 0.0
    %86 = vmatpush2.msra.mxu0 0.0
    %87 = vmatprep.subr.mxu0 0.0
    %88 = vmatpush2.msra.mxu0 0.0
    %89 = vmatprep.subr.mxu0 0.0
    %90 = vmatpush2.msra.mxu0 0.0
    %91 = vmatprep.subr.mxu0 0.0
    %92 = vmatpush2.msra.mxu0 0.0
    %93 = vmatprep.subr.mxu0 0.0
    %94 = vmatpush2.msra.mxu0 0.0
    %95 = vmatprep.subr.mxu0 0.0
    %96 = vmatpush2.msra.mxu0 0.0
    %97 = vmatprep.subr.mxu0 0.0
    %98 = vmatpush2.msra.mxu0 0.0
    %99 = vmatprep.subr.mxu0 0.0
    %100 = vmatpush2.msra.mxu0 0.0
    %101 = vmatprep.subr.mxu0 0.0
    %102 = vmatpush2.msra.mxu0 0.0
    %103 = vmatprep.subr.mxu0 0.0
    %104 = vmatpush2.msra.mxu0 0.0
    %105 = vmatprep.subr.mxu0 0.0
    %106 = vmatpush2.msra.mxu0 0.0
    %107 = vmatprep.subr.mxu0 0.0
    %108 = vmatpush2.msra.mxu0 0.0
    %109 = vmatprep.subr.mxu0 0.0
    %110 = vmatpush2.msra.mxu0 0.0
    %111 = vmatprep.subr.mxu0 0.0
    %112 = vmatpush2.msra.mxu0 0.0
    %113 = vmatprep.subr.mxu0 0.0
    %114 = vmatpush2.msra.mxu0 0.0
    %115 = vmatprep.subr.mxu0 0.0
    %116 = vmatpush2.msra.mxu0 0.0
    %117 = vmatprep.mubr.f32.mxu0 0.0
    %118 = vmatmul.mubr.f32.gmra.mxu0 %v51
    %v119 = vpop.f32.mrf.mxu0
    %v120 = vadd.f32 %v48, %v119
    %v121 = vpop.f32.mrf.mxu0
    %122 = vdwg.mxu0
    %123 = vset.pattern.permute.xlu0 1
    %124 = vperm.xlu0 %123, %v37
    %v125 = vpop.permute.xlu0 %124
    %v127 = vlaneseq
    %v128 = vshrl.u32 %v127, 7
    %v129 = vsub.s32 1, %v128
    %v130 = vrot.slane %v38, %v129
    %v131 = vmul.f32 %v125, %v130
    %v132 = vadd.f32 %v120, %v131
    %133 = vst.msk [vmem:[#allocation5] sm:$0xff] %vm49, %v132
    // Predicated region
    $region22: #{forward.1} parent=1 // pred_check
      _
    $region23: #{forward.1} parent=1 // pred_check_branch
      %135 = sbr.rel (0) target = $region25
    $region24: #{forward.1} parent=1 // pred_region
      %s137 = ssub.s32 128, 128
      %138 = vsyncadd [#allocation4], %s137
      %s140 = sshll.u32 [#allocation5], 4
      %s141 = int_to_ptr.vmem [resolvable:$true] %s140
      %143 = dma.vmem_to_hbm [thread:$0]  %s141, 128, %s4, [#allocation4]
    $region25: #{forward.1} parent=1 // pred_fallthru
      _
    // Predicated region
    $region26: #{forward.1} parent=1 // pred_check
      _
    $region27: #{forward.1} parent=1 // pred_check_branch
      %145 = sbr.rel (0) target = $region29
    $region28: #{forward.1} parent=1 // pred_region
      %146 = dma.done [#allocation4], 128
    $region29: #{forward.1} parent=1 // pred_fallthru
      _
    %147 = vsyncpa [#allocation3], 1
    %148 = vsyncpa [#allocation4], 1

</llo_original>
